<compile_context>
chip_gen: v6e
topology: v6e:2x2x1
jax: 0.10.0
libtpu: 0.0.40
codegen_flags: <defaults>
</compile_context>

<pallas_src>
import functools

import jax
import jax.numpy as jnp
from jax.experimental import pallas as pl
from jax.experimental.pallas import tpu as pltpu


def _round_up(x, m):
    return (x + m - 1) // m * m


def _shift_ce_rows_kernel(pad_length, extra_pad, batch,
                          tgt_ref, x1_ref, x2_ref, o_ref):
    """Per-row shifted soft-target cross entropy for a (TB, C) block of rows.

    loss[b] = (m[b] + lse[b]) * sum_k x2[b, k] - sum_k x1[b, k] * x2[b, k + t_b]
    with lse folding the module's zero padding analytically:
    lse[b] = log( sum_k exp(x1[b, k] - m[b]) + extra_pad * exp(-m[b]) ).
    """
    tb, c = x1_ref.shape
    x1 = x1_ref[...].astype(jnp.float32)        # (TB, C) f32
    x2 = x2_ref[...]                            # (TB, C) native dtype (f32/bf16)
    tgt = tgt_ref[...]                          # (TB, 1) int32

    # ones column: lane reductions are routed to the (otherwise idle) MXU.
    ones_col = jnp.ones((c, 1), jnp.float32)

    # log-sum-exp of the (implicitly zero-padded) x1 row.  m >= 0 is a valid
    # stabilizer because the padded row always contains zeros.  extra_pad may be
    # negative when (c - n) > 2*pad; the correction stays exact because sum_e
    # already contains (c - n) copies of exp(-m) from the zero tail lanes.
    m = jnp.maximum(jnp.max(x1, axis=-1, keepdims=True), 0.0)       # (TB, 1)
    e = jnp.exp(x1 - m)                                             # (TB, C)
    sum_e = jnp.dot(e, ones_col, preferred_element_type=jnp.float32)
    lse = jnp.log(sum_e + extra_pad * jnp.exp(-m))                  # (TB, 1)

    s2 = jnp.dot(x2.astype(jnp.float32), ones_col,
                 preferred_element_type=jnp.float32)                # (TB, 1)

    # Shifted-x2 window: 2*pad static cyclic rolls (XLU) + per-block selects.
    # z[b, k] = x2[b, (k + t_b) mod C].  Lanes that wrap around land where x1's
    # zero tail is (the wrapper guarantees c - n >= pad_length), so they never
    # contribute to the dot below; out-of-range positive shifts read the zero
    # tail directly and negative shifts wrap onto the zero tail, both correct.
    z = x2                                       # the t == 0 candidate
    for t in range(-pad_length, pad_length + 1):
        if t == 0:
            continue
        cand = pltpu.roll(x2, shift=(-t) % c, axis=1)               # (TB, C)
        z = jnp.where(tgt == t, cand, z)

    dot = jnp.dot(x1 * z.astype(jnp.float32), ones_col,
                  preferred_element_type=jnp.float32)               # (TB, 1)
    loss = (m + lse) * s2 - dot                                     # (TB, 1)

    # Mask rows beyond the true batch (last partial block reads undefined HBM
    # pad; all arithmetic on those rows is neutralized by this select).
    row = pl.program_id(0) * tb + jax.lax.broadcasted_iota(jnp.int32, (tb, 1), 0)
    o_ref[...] = jnp.where(row < batch, loss, 0.0)


def shift_cross_entropy(x1, x2, target, pad_length=5, block_rows=None):
    """Pallas equivalent of ShiftCrossEntropy()(x1, x2, target) with the default
    criterion (symmetric=False, detach_targets=False, nn.CrossEntropyLoss())."""
    b, n = x1.shape
    assert x2.shape == (b, n)

    # Lane-dense bin axis.  The roll-based shift requires at least pad_length
    # zero tail lanes, so add an extra 128-lane group when the natural round-up
    # leaves insufficient slack (e.g. n an exact multiple of 128).
    c = _round_up(max(n, 1), 128)
    if c - n < pad_length:
        c += 128
    assert c - n >= pad_length, "roll-based shift needs >= pad_length zero tail lanes"

    if c != n:
        x1 = jnp.pad(x1, ((0, 0), (0, c - n)))
        x2 = jnp.pad(x2, ((0, 0), (0, c - n)))
    # Exact analytic LSE correction for the module's 2*pad zero pads minus the
    # (c - n) zero lanes already present; may be negative, stays exact.
    extra_pad = float(2 * pad_length - (c - n))

    # Valid module inputs satisfy |target| <= pad_length (the PyTorch gather
    # index would be out of range otherwise); clamp for in-kernel robustness.
    tgt = jnp.clip(target.astype(jnp.int32), -pad_length, pad_length).reshape(b, 1)

    # Row tile: size so double-buffered inputs + in-kernel f32 temporaries stay
    # within ~24 MiB (safe for v7x's 64 MiB VMEM), and split the batch over at
    # least two grid steps so the fully-parallel axis can shard across the two
    # v7x TensorCores.
    d1 = jnp.dtype(x1.dtype).itemsize
    d2 = jnp.dtype(x2.dtype).itemsize
    bytes_per_row = (2 * c * (d1 + d2)       # double-buffered x1 / x2 blocks
                     + 6 * c * 4             # in-kernel f32 temporaries (x1, exp, z, ...)
                     + 4 * 128 * 4)          # (tb, 1) target / output blocks, lane-padded
    budget = 24 * 1024 * 1024
    tb_cap = max(8, min(2048, (budget // bytes_per_row) // 8 * 8))
    if block_rows is not None:
        tb = max(8, min(_round_up(block_rows, 8), tb_cap))
    else:
        tb = max(8, min(tb_cap, _round_up(-(-b // 2), 8)))
    grid = (pl.cdiv(b, tb),)

    # Explicit scoped-VMEM limit from the real footprint (with headroom), kept
    # under v7x's physical 64 MiB.
    vmem_limit = int(min(48 * 1024 * 1024,
                         max(32 * 1024 * 1024, 2 * tb * bytes_per_row)))

    kernel = functools.partial(_shift_ce_rows_kernel, pad_length, extra_pad, b)

    row_losses = pl.pallas_call(
        kernel,
        out_shape=jax.ShapeDtypeStruct((b, 1), jnp.float32),
        grid=grid,
        in_specs=[
            pl.BlockSpec((tb, 1), lambda i: (i, 0)),    # target shifts
            pl.BlockSpec((tb, c), lambda i: (i, 0)),    # x1 logits
            pl.BlockSpec((tb, c), lambda i: (i, 0)),    # x2 logits
        ],
        out_specs=pl.BlockSpec((tb, 1), lambda i: (i, 0)),
        compiler_params=pltpu.CompilerParams(
            dimension_semantics=("parallel",),
            vmem_limit_bytes=vmem_limit),
    )(tgt, x1, x2)

    # reduction='mean' over the batch.
    return jnp.sum(row_losses) / b


def _reference(x1, x2, target, pad_length=5):
    """Pure-JAX reference mirroring the PyTorch module."""
    x1 = x1.astype(jnp.float32)
    x2 = x2.astype(jnp.float32)
    x1p = jnp.pad(x1, ((0, 0), (pad_length, pad_length)))
    x2p = jnp.pad(x2, ((0, 0), (2 * pad_length, 2 * pad_length)))
    idx = target[:, None] + jnp.arange(x1p.shape[-1])[None, :] + pad_length
    shift_x2 = jnp.take_along_axis(x2p, idx, axis=1)
    log_sm = jax.nn.log_softmax(x1p, axis=-1)
    return jnp.mean(-jnp.sum(shift_x2 * log_sm, axis=-1))


if __name__ == "__main__":
    key = jax.random.PRNGKey(0)
    k1, k2, k3, k4, k5, k6 = jax.random.split(key, 6)
    PAD = 5

    # Case 1: bins an exact multiple of 128 (forces the extra 128-lane group for
    # the roll-based shift), single-ish grid: (B, N) = (8, 128).
    B1, N1 = 8, 128
    x1 = jax.random.normal(k1, (B1, N1), dtype=jnp.float32)
    x2 = jax.random.normal(k2, (B1, N1), dtype=jnp.float32)
    t1 = jax.random.randint(k3, (B1,), -PAD, PAD + 1, dtype=jnp.int32)
    out1 = jax.block_until_ready(shift_cross_entropy(x1, x2, t1, pad_length=PAD))
    ref1 = _reference(x1, x2, t1, pad_length=PAD)
    assert jnp.isfinite(out1), "non-finite loss (case 1)"
    assert jnp.allclose(out1, ref1, rtol=1e-3, atol=2e-3), (out1, ref1)

    # Case 2: non-128 bin count + multi-block grid with a partial last block.
    B2, N2 = 40, 96
    y1 = jax.random.normal(k4, (B2, N2), dtype=jnp.float32)
    y2 = jax.random.normal(k5, (B2, N2), dtype=jnp.float32)
    t2 = jax.random.randint(k6, (B2,), -PAD, PAD + 1, dtype=jnp.int32)
    out2 = jax.block_until_ready(
        shift_cross_entropy(y1, y2, t2, pad_length=PAD, block_rows=16))
    ref2 = _reference(y1, y2, t2, pad_length=PAD)
    assert jnp.isfinite(out2), "non-finite loss (case 2)"
    assert jnp.allclose(out2, ref2, rtol=1e-3, atol=2e-3), (out2, ref2)

    # TODO(synk): symmetric=True / detach_targets=True criterion variants are not
    # exercised; the default ShiftCrossEntropy configuration is implemented.
    print("KERNEL_OK")
</pallas_src>

<mosaic_0001>
module attributes {stable_mosaic.version = 11 : i64} {
  func.func @_shift_ce_rows_kernel(%arg0: i32, %arg1: memref<8x1xi32, #tpu.memory_space<vmem>>, %arg2: memref<8x256xf32, #tpu.memory_space<vmem>>, %arg3: memref<8x256xf32, #tpu.memory_space<vmem>>, %arg4: memref<8x1xf32, #tpu.memory_space<vmem>>) attributes {dimension_semantics = [#tpu.dimension_semantics<parallel>], iteration_bounds = array<i64: 1>, scalar_prefetch = 0 : i64, scratch_operands = 0 : i64, tpu.core_type = #tpu.core_type<tc>, window_params = [{transform_indices = @transform_0, window_bounds = array<i64: 8, 1>}, {transform_indices = @transform_1, window_bounds = array<i64: 8, 256>}, {transform_indices = @transform_2, window_bounds = array<i64: 8, 256>}, {transform_indices = @transform_3, window_bounds = array<i64: 8, 1>}]} {
    %c0 = arith.constant 0 : index
    %c0_0 = arith.constant 0 : index
    %0 = vector.load %arg2[%c0, %c0_0] : memref<8x256xf32, #tpu.memory_space<vmem>>, vector<8x256xf32>
    %c0_1 = arith.constant 0 : index
    %c0_2 = arith.constant 0 : index
    %1 = vector.load %arg3[%c0_1, %c0_2] : memref<8x256xf32, #tpu.memory_space<vmem>>, vector<8x256xf32>
    %c0_3 = arith.constant 0 : index
    %c0_4 = arith.constant 0 : index
    %2 = vector.load %arg1[%c0_3, %c0_4] : memref<8x1xi32, #tpu.memory_space<vmem>>, vector<8x1xi32>
    %cst = arith.constant 1.000000e+00 : f32
    %3 = vector.broadcast %cst : f32 to vector<256x1xf32>
    %cst_5 = arith.constant dense<0xFF800000> : vector<8xf32>
    %4 = vector.multi_reduction <maximumf>, %0, %cst_5 [1] : vector<8x256xf32> to vector<8xf32>
    %5 = vector.shape_cast %4 : vector<8xf32> to vector<8x1xf32>
    %cst_6 = arith.constant 0.000000e+00 : f32
    %6 = vector.broadcast %cst_6 : f32 to vector<8x1xf32>
    %7 = arith.maximumf %5, %6 : vector<8x1xf32>
    %8 = vector.broadcast %7 : vector<8x1xf32> to vector<8x256xf32>
    %9 = arith.subf %0, %8 : vector<8x256xf32>
    %10 = math.exp %9 : vector<8x256xf32>
    %cst_7 = arith.constant dense<0.000000e+00> : vector<8x1xf32>
    %11 = tpu.matmul %10, %3, %cst_7 {dimension_numbers = #tpu.dot_dimension_numbers<[1], [0], [0], [1], [0, 0, 1, 1], [], []>} : vector<8x256xf32>, vector<256x1xf32>, vector<8x1xf32> -> vector<8x1xf32>
    %cst_8 = arith.constant 0.000000e+00 : f32
    %12 = vector.broadcast %cst_8 : f32 to vector<8x1xf32>
    %13 = arith.subf %12, %7 : vector<8x1xf32>
    %14 = math.exp %13 : vector<8x1xf32>
    %cst_9 = arith.constant -1.180000e+02 : f32
    %15 = vector.broadcast %cst_9 : f32 to vector<8x1xf32>
    %16 = arith.mulf %15, %14 : vector<8x1xf32>
    %17 = arith.addf %11, %16 : vector<8x1xf32>
    %18 = math.log %17 : vector<8x1xf32>
    %cst_10 = arith.constant dense<0.000000e+00> : vector<8x1xf32>
    %19 = tpu.matmul %1, %3, %cst_10 {dimension_numbers = #tpu.dot_dimension_numbers<[1], [0], [0], [1], [0, 0, 1, 1], [], []>} : vector<8x256xf32>, vector<256x1xf32>, vector<8x1xf32> -> vector<8x1xf32>
    %c5_i32 = arith.constant 5 : i32
    %20 = tpu.dynamic_rotate %1 by %c5_i32 dim 1 : vector<8x256xf32>, i32 -> vector<8x256xf32>
    %c-5_i32 = arith.constant -5 : i32
    %21 = vector.broadcast %c-5_i32 : i32 to vector<8x1xi32>
    %22 = arith.cmpi eq, %2, %21 : vector<8x1xi32>
    %23 = vector.shape_cast %22 : vector<8x1xi1> to vector<8x1xi1>
    %24 = vector.broadcast %23 : vector<8x1xi1> to vector<8x256xi1>
    %25 = arith.select %24, %20, %1 : vector<8x256xi1>, vector<8x256xf32>
    %c4_i32 = arith.constant 4 : i32
    %26 = tpu.dynamic_rotate %1 by %c4_i32 dim 1 : vector<8x256xf32>, i32 -> vector<8x256xf32>
    %c-4_i32 = arith.constant -4 : i32
    %27 = vector.broadcast %c-4_i32 : i32 to vector<8x1xi32>
    %28 = arith.cmpi eq, %2, %27 : vector<8x1xi32>
    %29 = vector.shape_cast %28 : vector<8x1xi1> to vector<8x1xi1>
    %30 = vector.broadcast %29 : vector<8x1xi1> to vector<8x256xi1>
    %31 = arith.select %30, %26, %25 : vector<8x256xi1>, vector<8x256xf32>
    %c3_i32 = arith.constant 3 : i32
    %32 = tpu.dynamic_rotate %1 by %c3_i32 dim 1 : vector<8x256xf32>, i32 -> vector<8x256xf32>
    %c-3_i32 = arith.constant -3 : i32
    %33 = vector.broadcast %c-3_i32 : i32 to vector<8x1xi32>
    %34 = arith.cmpi eq, %2, %33 : vector<8x1xi32>
    %35 = vector.shape_cast %34 : vector<8x1xi1> to vector<8x1xi1>
    %36 = vector.broadcast %35 : vector<8x1xi1> to vector<8x256xi1>
    %37 = arith.select %36, %32, %31 : vector<8x256xi1>, vector<8x256xf32>
    %c2_i32 = arith.constant 2 : i32
    %38 = tpu.dynamic_rotate %1 by %c2_i32 dim 1 : vector<8x256xf32>, i32 -> vector<8x256xf32>
    %c-2_i32 = arith.constant -2 : i32
    %39 = vector.broadcast %c-2_i32 : i32 to vector<8x1xi32>
    %40 = arith.cmpi eq, %2, %39 : vector<8x1xi32>
    %41 = vector.shape_cast %40 : vector<8x1xi1> to vector<8x1xi1>
    %42 = vector.broadcast %41 : vector<8x1xi1> to vector<8x256xi1>
    %43 = arith.select %42, %38, %37 : vector<8x256xi1>, vector<8x256xf32>
    %c1_i32 = arith.constant 1 : i32
    %44 = tpu.dynamic_rotate %1 by %c1_i32 dim 1 : vector<8x256xf32>, i32 -> vector<8x256xf32>
    %c-1_i32 = arith.constant -1 : i32
    %45 = vector.broadcast %c-1_i32 : i32 to vector<8x1xi32>
    %46 = arith.cmpi eq, %2, %45 : vector<8x1xi32>
    %47 = vector.shape_cast %46 : vector<8x1xi1> to vector<8x1xi1>
    %48 = vector.broadcast %47 : vector<8x1xi1> to vector<8x256xi1>
    %49 = arith.select %48, %44, %43 : vector<8x256xi1>, vector<8x256xf32>
    %c255_i32 = arith.constant 255 : i32
    %50 = tpu.dynamic_rotate %1 by %c255_i32 dim 1 : vector<8x256xf32>, i32 -> vector<8x256xf32>
    %c1_i32_11 = arith.constant 1 : i32
    %51 = vector.broadcast %c1_i32_11 : i32 to vector<8x1xi32>
    %52 = arith.cmpi eq, %2, %51 : vector<8x1xi32>
    %53 = vector.shape_cast %52 : vector<8x1xi1> to vector<8x1xi1>
    %54 = vector.broadcast %53 : vector<8x1xi1> to vector<8x256xi1>
    %55 = arith.select %54, %50, %49 : vector<8x256xi1>, vector<8x256xf32>
    %c254_i32 = arith.constant 254 : i32
    %56 = tpu.dynamic_rotate %1 by %c254_i32 dim 1 : vector<8x256xf32>, i32 -> vector<8x256xf32>
    %c2_i32_12 = arith.constant 2 : i32
    %57 = vector.broadcast %c2_i32_12 : i32 to vector<8x1xi32>
    %58 = arith.cmpi eq, %2, %57 : vector<8x1xi32>
    %59 = vector.shape_cast %58 : vector<8x1xi1> to vector<8x1xi1>
    %60 = vector.broadcast %59 : vector<8x1xi1> to vector<8x256xi1>
    %61 = arith.select %60, %56, %55 : vector<8x256xi1>, vector<8x256xf32>
    %c253_i32 = arith.constant 253 : i32
    %62 = tpu.dynamic_rotate %1 by %c253_i32 dim 1 : vector<8x256xf32>, i32 -> vector<8x256xf32>
    %c3_i32_13 = arith.constant 3 : i32
    %63 = vector.broadcast %c3_i32_13 : i32 to vector<8x1xi32>
    %64 = arith.cmpi eq, %2, %63 : vector<8x1xi32>
    %65 = vector.shape_cast %64 : vector<8x1xi1> to vector<8x1xi1>
    %66 = vector.broadcast %65 : vector<8x1xi1> to vector<8x256xi1>
    %67 = arith.select %66, %62, %61 : vector<8x256xi1>, vector<8x256xf32>
    %c252_i32 = arith.constant 252 : i32
    %68 = tpu.dynamic_rotate %1 by %c252_i32 dim 1 : vector<8x256xf32>, i32 -> vector<8x256xf32>
    %c4_i32_14 = arith.constant 4 : i32
    %69 = vector.broadcast %c4_i32_14 : i32 to vector<8x1xi32>
    %70 = arith.cmpi eq, %2, %69 : vector<8x1xi32>
    %71 = vector.shape_cast %70 : vector<8x1xi1> to vector<8x1xi1>
    %72 = vector.broadcast %71 : vector<8x1xi1> to vector<8x256xi1>
    %73 = arith.select %72, %68, %67 : vector<8x256xi1>, vector<8x256xf32>
    %c251_i32 = arith.constant 251 : i32
    %74 = tpu.dynamic_rotate %1 by %c251_i32 dim 1 : vector<8x256xf32>, i32 -> vector<8x256xf32>
    %c5_i32_15 = arith.constant 5 : i32
    %75 = vector.broadcast %c5_i32_15 : i32 to vector<8x1xi32>
    %76 = arith.cmpi eq, %2, %75 : vector<8x1xi32>
    %77 = vector.shape_cast %76 : vector<8x1xi1> to vector<8x1xi1>
    %78 = vector.broadcast %77 : vector<8x1xi1> to vector<8x256xi1>
    %79 = arith.select %78, %74, %73 : vector<8x256xi1>, vector<8x256xf32>
    %80 = arith.mulf %0, %79 : vector<8x256xf32>
    %cst_16 = arith.constant dense<0.000000e+00> : vector<8x1xf32>
    %81 = tpu.matmul %80, %3, %cst_16 {dimension_numbers = #tpu.dot_dimension_numbers<[1], [0], [0], [1], [0, 0, 1, 1], [], []>} : vector<8x256xf32>, vector<256x1xf32>, vector<8x1xf32> -> vector<8x1xf32>
    %82 = arith.addf %7, %18 : vector<8x1xf32>
    %83 = arith.mulf %82, %19 : vector<8x1xf32>
    %84 = arith.subf %83, %81 : vector<8x1xf32>
    %c8_i32 = arith.constant 8 : i32
    %85 = arith.muli %arg0, %c8_i32 : i32
    %86 = tpu.iota {dimensions = array<i32: 0>} : vector<8x1xi32>
    %87 = vector.broadcast %85 : i32 to vector<8x1xi32>
    %88 = arith.addi %87, %86 : vector<8x1xi32>
    %c8_i32_17 = arith.constant 8 : i32
    %89 = vector.broadcast %c8_i32_17 : i32 to vector<8x1xi32>
    %90 = arith.cmpi slt, %88, %89 : vector<8x1xi32>
    %cst_18 = arith.constant 0.000000e+00 : f32
    %91 = vector.broadcast %cst_18 : f32 to vector<8x1xf32>
    %92 = arith.select %90, %84, %91 : vector<8x1xi1>, vector<8x1xf32>
    %c0_19 = arith.constant 0 : index
    %c0_20 = arith.constant 0 : index
    %93 = vector.load %arg4[%c0_19, %c0_20] : memref<8x1xf32, #tpu.memory_space<vmem>>, vector<8x1xf32>
    tpu.vector_store %arg4[%c0_19, %c0_20], %92 {strides = array<i32>} : memref<8x1xf32, #tpu.memory_space<vmem>>, vector<8x1xf32>,
    return
  }
  func.func @transform_0(%arg0: i32) -> (i32, i32) {
    %c0_i32 = arith.constant 0 : i32
    %c0_i32_0 = arith.constant 0 : i32
    return %arg0, %c0_i32 : i32, i32
  }
  func.func @transform_1(%arg0: i32) -> (i32, i32) {
    %c0_i32 = arith.constant 0 : i32
    %c0_i32_0 = arith.constant 0 : i32
    return %arg0, %c0_i32 : i32, i32
  }
  func.func @transform_2(%arg0: i32) -> (i32, i32) {
    %c0_i32 = arith.constant 0 : i32
    %c0_i32_0 = arith.constant 0 : i32
    return %arg0, %c0_i32 : i32, i32
  }
  func.func @transform_3(%arg0: i32) -> (i32, i32) {
    %c0_i32 = arith.constant 0 : i32
    %c0_i32_0 = arith.constant 0 : i32
    return %arg0, %c0_i32 : i32, i32
  }
}

</mosaic_0001>

<llo_original>
// kernel: tpu_custom_call.1
$region0: #{tpu_custom_call.1}
  #allocation0 [shape = 'u32[]', space=smem, size = 0x4, offset = 0x4, fixed_abs, tag = 'smem constant byte address 0x4 - core index']
  #allocation1 [shape = 'u32[144,128]{1,0:T(1,128)}', space=vmem, size = 0x12000, scoped, tag = 'internal scratch']
  %s0 = inlined_call_operand.vmem [shape: s32[8,1], index: 0, kind: input, shape index: {}]
  %s1 = inlined_call_operand.hbm [shape: f32[8,256], index: 1, kind: input, shape index: {}]
  %s2 = inlined_call_operand.hbm [shape: f32[8,256], index: 2, kind: input, shape index: {}]
  %s3 = inlined_call_operand.vmem [shape: f32[8,1], index: 3, kind: output, shape index: {}]
  %s4 = sld [smem:[#allocation0]]
  $region30: #{tpu_custom_call.1} parent=0
    _
  %s6 = ssub.s32 1, %s4
  %s7 = scalar_select 0, %s6, %s4
  $region1: #{tpu_custom_call.1} parent=0
    #allocation2 [shape = 'u8[8192]{0}', space=vmem, size = 0x2000, scoped, tag = 'input window, operand 1, single buffered']
    #allocation3 [shape = 's32[1]{0}', space=sflag, size = 0x4, scoped, tag = 'scoped memory for tpu_custom_call.1']
    #allocation4 [shape = 'u8[8192]{0}', space=vmem, size = 0x2000, scoped, tag = 'input window, operand 2, single buffered']
    #allocation5 [shape = 's32[1]{0}', space=sflag, size = 0x4, scoped, tag = 'scoped memory for tpu_custom_call.1']
    %8 = vsyncpa [#allocation3], 0
    %9 = vsyncpa [#allocation5], 0
    // Predicated region
    $region2: #{tpu_custom_call.1} parent=1 // pred_check
      _
    $region3: #{tpu_custom_call.1} parent=1 // pred_check_branch
      %11 = sbr.rel (0) target = $region5
    $region4: #{tpu_custom_call.1} parent=1 // pred_region
      _
    $region5: #{tpu_custom_call.1} parent=1 // pred_fallthru
      _
    // Predicated region
    $region6: #{tpu_custom_call.1} parent=1 // pred_check
      _
    $region7: #{tpu_custom_call.1} parent=1 // pred_check_branch
      %13 = sbr.rel (0) target = $region9
    $region8: #{tpu_custom_call.1} parent=1 // pred_region
      %s15 = ssub.s32 256, 256
      %16 = vsyncadd [#allocation3], %s15
      %s18 = sshll.u32 [#allocation2], 4
      %s19 = int_to_ptr.vmem [resolvable:$true] %s18
      %21 = dma.hbm_to_vmem [thread:$0]  %s1, 256, %s19, [#allocation3]
    $region9: #{tpu_custom_call.1} parent=1 // pred_fallthru
      _
    // Predicated region
    $region10: #{tpu_custom_call.1} parent=1 // pred_check
      _
    $region11: #{tpu_custom_call.1} parent=1 // pred_check_branch
      %23 = sbr.rel (0) target = $region13
    $region12: #{tpu_custom_call.1} parent=1 // pred_region
      %s25 = ssub.s32 256, 256
      %26 = vsyncadd [#allocation5], %s25
      %s28 = sshll.u32 [#allocation4], 4
      %s29 = int_to_ptr.vmem [resolvable:$true] %s28
      %31 = dma.hbm_to_vmem [thread:$0]  %s2, 256, %s29, [#allocation5]
    $region13: #{tpu_custom_call.1} parent=1 // pred_fallthru
      _
    // Predicated region
    $region14: #{tpu_custom_call.1} parent=1 // pred_check
      _
    $region15: #{tpu_custom_call.1} parent=1 // pred_check_branch
      %33 = sbr.rel (0) target = $region17
    $region16: #{tpu_custom_call.1} parent=1 // pred_region
      %34 = dma.done [#allocation3], 256
    $region17: #{tpu_custom_call.1} parent=1 // pred_fallthru
      _
    // Predicated region
    $region18: #{tpu_custom_call.1} parent=1 // pred_check
      _
    $region19: #{tpu_custom_call.1} parent=1 // pred_check_branch
      %36 = sbr.rel (0) target = $region21
    $region20: #{tpu_custom_call.1} parent=1 // pred_region
      %37 = dma.done [#allocation5], 256
    $region21: #{tpu_custom_call.1} parent=1 // pred_fallthru
      _
    %v38 = vld [vmem:[#allocation2] sm:$0xff]
    %v39 = vld [vmem:[#allocation2 + $0x8] sm:$0xff]
    %v40 = vld [vmem:[#allocation4] sm:$0xff]
    %v41 = vld [vmem:[#allocation4 + $0x8] sm:$0xff]
    %v42 = vld [vmem:[%s0] sm:$0xff]
    %v43 = vmax.f32 %v38, %v39
    %44 = vmax.xlane.f32.xlu0 %v43
    %v45 = vpop.xlane.xlu0 %44
    %v46 = vmax.f32 %v45, 0.0
    %v47 = vsub.f32 %v38, %v46
    %v48 = vsub.f32 %v39, %v46
    %v49 = vmul.f32 %v47, 1.442695
    %v50 = vpow.pop %v49
    %v51 = vmul.f32 %v48, 1.442695
    %v52 = vpow.pop %v51
    %v53 = vsub.f32 0.0, %v46
    %v54 = vmul.f32 %v53, 1.442695
    %v55 = vpow.pop %v54
    %v56 = vmul.f32 %v55, -118.0
    %57 = vmatprep.subr.mxu0 0.0
    %58 = vmatpush1.msra.mxu0 1.0
    %59 = vmatprep.subr.mxu0 0.0
    %60 = vmatpush1.msra.mxu0 1.0
    %61 = vmatprep.subr.mxu0 0.0
    %62 = vmatpush1.msra.mxu0 1.0
    %63 = vmatprep.subr.mxu0 0.0
    %64 = vmatpush1.msra.mxu0 1.0
    %65 = vmatprep.subr.mxu0 0.0
    %66 = vmatpush1.msra.mxu0 1.0
    %67 = vmatprep.subr.mxu0 0.0
    %68 = vmatpush1.msra.mxu0 1.0
    %69 = vmatprep.subr.mxu0 0.0
    %70 = vmatpush1.msra.mxu0 1.0
    %71 = vmatprep.subr.mxu0 0.0
    %72 = vmatpush1.msra.mxu0 1.0
    %73 = vmatprep.subr.mxu0 0.0
    %74 = vmatpush1.msra.mxu0 1.0
    %75 = vmatprep.subr.mxu0 0.0
    %76 = vmatpush1.msra.mxu0 1.0
    %77 = vmatprep.subr.mxu0 0.0
    %78 = vmatpush1.msra.mxu0 1.0
    %79 = vmatprep.subr.mxu0 0.0
    %80 = vmatpush1.msra.mxu0 1.0
    %81 = vmatprep.subr.mxu0 0.0
    %82 = vmatpush1.msra.mxu0 1.0
    %83 = vmatprep.subr.mxu0 0.0
    %84 = vmatpush1.msra.mxu0 1.0
    %85 = vmatprep.subr.mxu0 0.0
    %86 = vmatpush1.msra.mxu0 1.0
    %87 = vmatprep.subr.mxu0 0.0
    %88 = vmatpush1.msra.mxu0 1.0
    %89 = vmatprep.subr.mxu0 0.0
    %90 = vmatpush2.msra.mxu0 1.0
    %91 = vmatprep.subr.mxu0 0.0
    %92 = vmatpush2.msra.mxu0 1.0
    %93 = vmatprep.subr.mxu0 0.0
    %94 = vmatpush2.msra.mxu0 1.0
    %95 = vmatprep.subr.mxu0 0.0
    %96 = vmatpush2.msra.mxu0 1.0
    %97 = vmatprep.subr.mxu0 0.0
    %98 = vmatpush2.msra.mxu0 1.0
    %99 = vmatprep.subr.mxu0 0.0
    %100 = vmatpush2.msra.mxu0 1.0
    %101 = vmatprep.subr.mxu0 0.0
    %102 = vmatpush2.msra.mxu0 1.0
    %103 = vmatprep.subr.mxu0 0.0
    %104 = vmatpush2.msra.mxu0 1.0
    %105 = vmatprep.subr.mxu0 0.0
    %106 = vmatpush2.msra.mxu0 1.0
    %107 = vmatprep.subr.mxu0 0.0
    %108 = vmatpush2.msra.mxu0 1.0
    %109 = vmatprep.subr.mxu0 0.0
    %110 = vmatpush2.msra.mxu0 1.0
    %111 = vmatprep.subr.mxu0 0.0
    %112 = vmatpush2.msra.mxu0 1.0
    %113 = vmatprep.subr.mxu0 0.0
    %114 = vmatpush2.msra.mxu0 1.0
    %115 = vmatprep.subr.mxu0 0.0
    %116 = vmatpush2.msra.mxu0 1.0
    %117 = vmatprep.subr.mxu0 0.0
    %118 = vmatpush2.msra.mxu0 1.0
    %119 = vmatprep.subr.mxu0 0.0
    %120 = vmatpush2.msra.mxu0 1.0
    %121 = vmatprep.mubr.f32.mxu0 %v52
    %122 = vmatmul.mubr.f32.gmra.mxu0 %v50
    %v123 = vpop.f32.mrf.mxu0
    %v124 = vadd.f32 %v56, %v123
    %v125 = vpop.f32.mrf.mxu0
    %126 = vdwg.mxu0
    %v127 = vlog2.pop %v124
    %v128 = vmul.f32 %v127, 0.6931472
    %129 = vmatprep.subr.mxu0 0.0
    %130 = vmatpush1.msra.mxu0 1.0
    %131 = vmatprep.subr.mxu0 0.0
    %132 = vmatpush1.msra.mxu0 1.0
    %133 = vmatprep.subr.mxu0 0.0
    %134 = vmatpush1.msra.mxu0 1.0
    %135 = vmatprep.subr.mxu0 0.0
    %136 = vmatpush1.msra.mxu0 1.0
    %137 = vmatprep.subr.mxu0 0.0
    %138 = vmatpush1.msra.mxu0 1.0
    %139 = vmatprep.subr.mxu0 0.0
    %140 = vmatpush1.msra.mxu0 1.0
    %141 = vmatprep.subr.mxu0 0.0
    %142 = vmatpush1.msra.mxu0 1.0
    %143 = vmatprep.subr.mxu0 0.0
    %144 = vmatpush1.msra.mxu0 1.0
    %145 = vmatprep.subr.mxu0 0.0
    %146 = vmatpush1.msra.mxu0 1.0
    %147 = vmatprep.subr.mxu0 0.0
    %148 = vmatpush1.msra.mxu0 1.0
    %149 = vmatprep.subr.mxu0 0.0
    %150 = vmatpush1.msra.mxu0 1.0
    %151 = vmatprep.subr.mxu0 0.0
    %152 = vmatpush1.msra.mxu0 1.0
    %153 = vmatprep.subr.mxu0 0.0
    %154 = vmatpush1.msra.mxu0 1.0
    %155 = vmatprep.subr.mxu0 0.0
    %156 = vmatpush1.msra.mxu0 1.0
    %157 = vmatprep.subr.mxu0 0.0
    %158 = vmatpush1.msra.mxu0 1.0
    %159 = vmatprep.subr.mxu0 0.0
    %160 = vmatpush1.msra.mxu0 1.0
    %161 = vmatprep.subr.mxu0 0.0
    %162 = vmatpush2.msra.mxu0 1.0
    %163 = vmatprep.subr.mxu0 0.0
    %164 = vmatpush2.msra.mxu0 1.0
    %165 = vmatprep.subr.mxu0 0.0
    %166 = vmatpush2.msra.mxu0 1.0
    %167 = vmatprep.subr.mxu0 0.0
    %168 = vmatpush2.msra.mxu0 1.0
    %169 = vmatprep.subr.mxu0 0.0
    %170 = vmatpush2.msra.mxu0 1.0
    %171 = vmatprep.subr.mxu0 0.0
    %172 = vmatpush2.msra.mxu0 1.0
    %173 = vmatprep.subr.mxu0 0.0
    %174 = vmatpush2.msra.mxu0 1.0
    %175 = vmatprep.subr.mxu0 0.0
    %176 = vmatpush2.msra.mxu0 1.0
    %177 = vmatprep.subr.mxu0 0.0
    %178 = vmatpush2.msra.mxu0 1.0
    %179 = vmatprep.subr.mxu0 0.0
    %180 = vmatpush2.msra.mxu0 1.0
    %181 = vmatprep.subr.mxu0 0.0
    %182 = vmatpush2.msra.mxu0 1.0
    %183 = vmatprep.subr.mxu0 0.0
    %184 = vmatpush2.msra.mxu0 1.0
    %185 = vmatprep.subr.mxu0 0.0
    %186 = vmatpush2.msra.mxu0 1.0
    %187 = vmatprep.subr.mxu0 0.0
    %188 = vmatpush2.msra.mxu0 1.0
    %189 = vmatprep.subr.mxu0 0.0
    %190 = vmatpush2.msra.mxu0 1.0
    %191 = vmatprep.subr.mxu0 0.0
    %192 = vmatpush2.msra.mxu0 1.0
    %193 = vmatprep.mubr.f32.mxu0 %v41
    %194 = vmatmul.mubr.f32.gmra.mxu0 %v40
    %v195 = vpop.f32.mrf.mxu0
    %v196 = vadd.f32 0.0, %v195
    %v197 = vpop.f32.mrf.mxu0
    %198 = vdwg.mxu0
    %199 = vrot.lane.b32.xlu0 %v40, 5
    %v200 = vpop.permute.xlu0 %199
    %201 = vrot.lane.b32.xlu0 %v41, 5
    %v202 = vpop.permute.xlu0 %201
    %v203 = vlaneseq
    %v204 = vand.u32 %v203, 127
    %vm205 = vcmp.lt.s32.totalorder %v204, 5
    %v206 = vsel %vm205, %v200, %v202
    %v207 = vsel %vm205, %v202, %v200
    %vm208 = vcmp.eq.s32.totalorder %v42, 4294967291
    %v209 = vsel %vm208, 1, 0
    %210 = vset.pattern.permute.xlu0 0
    %211 = vperm.xlu0 %210, %v209
    %v212 = vpop.permute.xlu0 %211
    %vm213 = vcmp.eq.s32.totalorder %v212, 1
    %v214 = vsel %vm213, %v207, %v40
    %v215 = vsel %vm213, %v206, %v41
    %216 = vrot.lane.b32.xlu0 %v40, 4
    %v217 = vpop.permute.xlu0 %216
    %218 = vrot.lane.b32.xlu0 %v41, 4
    %v219 = vpop.permute.xlu0 %218
    %vm220 = vcmp.lt.s32.totalorder %v204, 4
    %v221 = vsel %vm220, %v217, %v219
    %v222 = vsel %vm220, %v219, %v217
    %vm223 = vcmp.eq.s32.totalorder %v42, 4294967292
    %v224 = vsel %vm223, 1, 0
    %225 = vset.pattern.permute.xlu0 0
    %226 = vperm.xlu0 %225, %v224
    %v227 = vpop.permute.xlu0 %226
    %vm228 = vcmp.eq.s32.totalorder %v227, 1
    %v229 = vsel %vm228, %v222, %v214
    %v230 = vsel %vm228, %v221, %v215
    %231 = vrot.lane.b32.xlu0 %v40, 3
    %v232 = vpop.permute.xlu0 %231
    %233 = vrot.lane.b32.xlu0 %v41, 3
    %v234 = vpop.permute.xlu0 %233
    %vm235 = vcmp.lt.s32.totalorder %v204, 3
    %v236 = vsel %vm235, %v232, %v234
    %v237 = vsel %vm235, %v234, %v232
    %vm238 = vcmp.eq.s32.totalorder %v42, 4294967293
    %v239 = vsel %vm238, 1, 0
    %240 = vset.pattern.permute.xlu0 0
    %241 = vperm.xlu0 %240, %v239
    %v242 = vpop.permute.xlu0 %241
    %vm243 = vcmp.eq.s32.totalorder %v242, 1
    %v244 = vsel %vm243, %v237, %v229
    %v245 = vsel %vm243, %v236, %v230
    %246 = vrot.lane.b32.xlu0 %v40, 2
    %v247 = vpop.permute.xlu0 %246
    %248 = vrot.lane.b32.xlu0 %v41, 2
    %v249 = vpop.permute.xlu0 %248
    %vm250 = vcmp.lt.s32.totalorder %v204, 2
    %v251 = vsel %vm250, %v247, %v249
    %v252 = vsel %vm250, %v249, %v247
    %vm253 = vcmp.eq.s32.totalorder %v42, 4294967294
    %v254 = vsel %vm253, 1, 0
    %255 = vset.pattern.permute.xlu0 0
    %256 = vperm.xlu0 %255, %v254
    %v257 = vpop.permute.xlu0 %256
    %vm258 = vcmp.eq.s32.totalorder %v257, 1
    %v259 = vsel %vm258, %v252, %v244
    %v260 = vsel %vm258, %v251, %v245
    %261 = vrot.lane.b32.xlu0 %v40, 1
    %v262 = vpop.permute.xlu0 %261
    %263 = vrot.lane.b32.xlu0 %v41, 1
    %v264 = vpop.permute.xlu0 %263
    %vm265 = vcmp.lt.s32.totalorder %v204, 1
    %v266 = vsel %vm265, %v262, %v264
    %v267 = vsel %vm265, %v264, %v262
    %vm268 = vcmp.eq.s32.totalorder %v42, 4294967295
    %v269 = vsel %vm268, 1, 0
    %270 = vset.pattern.permute.xlu0 0
    %271 = vperm.xlu0 %270, %v269
    %v272 = vpop.permute.xlu0 %271
    %vm273 = vcmp.eq.s32.totalorder %v272, 1
    %v274 = vsel %vm273, %v267, %v259
    %v275 = vsel %vm273, %v266, %v260
    %276 = vrot.lane.b32.xlu0 %v40, 127
    %v277 = vpop.permute.xlu0 %276
    %278 = vrot.lane.b32.xlu0 %v41, 127
    %v279 = vpop.permute.xlu0 %278
    %vm280 = vcmp.lt.s32.totalorder %v204, 127
    %v281 = vsel %vm280, %v277, %v279
    %v282 = vsel %vm280, %v279, %v277
    %vm283 = vcmp.eq.s32.totalorder %v42, 1
    %v284 = vsel %vm283, 1, 0
    %285 = vset.pattern.permute.xlu0 0
    %286 = vperm.xlu0 %285, %v284
    %v287 = vpop.permute.xlu0 %286
    %vm288 = vcmp.eq.s32.totalorder %v287, 1
    %v289 = vsel %vm288, %v281, %v274
    %v290 = vsel %vm288, %v282, %v275
    %291 = vrot.lane.b32.xlu0 %v40, 126
    %v292 = vpop.permute.xlu0 %291
    %293 = vrot.lane.b32.xlu0 %v41, 126
    %v294 = vpop.permute.xlu0 %293
    %vm295 = vcmp.lt.s32.totalorder %v204, 126
    %v296 = vsel %vm295, %v292, %v294
    %v297 = vsel %vm295, %v294, %v292
    %vm298 = vcmp.eq.s32.totalorder %v42, 2
    %v299 = vsel %vm298, 1, 0
    %300 = vset.pattern.permute.xlu0 0
    %301 = vperm.xlu0 %300, %v299
    %v302 = vpop.permute.xlu0 %301
    %vm303 = vcmp.eq.s32.totalorder %v302, 1
    %v304 = vsel %vm303, %v296, %v289
    %v305 = vsel %vm303, %v297, %v290
    %306 = vrot.lane.b32.xlu0 %v40, 125
    %v307 = vpop.permute.xlu0 %306
    %308 = vrot.lane.b32.xlu0 %v41, 125
    %v309 = vpop.permute.xlu0 %308
    %vm310 = vcmp.lt.s32.totalorder %v204, 125
    %v311 = vsel %vm310, %v307, %v309
    %v312 = vsel %vm310, %v309, %v307
    %vm313 = vcmp.eq.s32.totalorder %v42, 3
    %v314 = vsel %vm313, 1, 0
    %315 = vset.pattern.permute.xlu0 0
    %316 = vperm.xlu0 %315, %v314
    %v317 = vpop.permute.xlu0 %316
    %vm318 = vcmp.eq.s32.totalorder %v317, 1
    %v319 = vsel %vm318, %v311, %v304
    %v320 = vsel %vm318, %v312, %v305
    %321 = vrot.lane.b32.xlu0 %v40, 124
    %v322 = vpop.permute.xlu0 %321
    %323 = vrot.lane.b32.xlu0 %v41, 124
    %v324 = vpop.permute.xlu0 %323
    %vm325 = vcmp.lt.s32.totalorder %v204, 124
    %v326 = vsel %vm325, %v322, %v324
    %v327 = vsel %vm325, %v324, %v322
    %vm328 = vcmp.eq.s32.totalorder %v42, 4
    %v329 = vsel %vm328, 1, 0
    %330 = vset.pattern.permute.xlu0 0
    %331 = vperm.xlu0 %330, %v329
    %v332 = vpop.permute.xlu0 %331
    %vm333 = vcmp.eq.s32.totalorder %v332, 1
    %v334 = vsel %vm333, %v326, %v319
    %v335 = vsel %vm333, %v327, %v320
    %336 = vrot.lane.b32.xlu0 %v40, 123
    %v337 = vpop.permute.xlu0 %336
    %338 = vrot.lane.b32.xlu0 %v41, 123
    %v339 = vpop.permute.xlu0 %338
    %vm340 = vcmp.lt.s32.totalorder %v204, 123
    %v341 = vsel %vm340, %v337, %v339
    %v342 = vsel %vm340, %v339, %v337
    %vm343 = vcmp.eq.s32.totalorder %v42, 5
    %v344 = vsel %vm343, 1, 0
    %345 = vset.pattern.permute.xlu0 0
    %346 = vperm.xlu0 %345, %v344
    %v347 = vpop.permute.xlu0 %346
    %vm348 = vcmp.eq.s32.totalorder %v347, 1
    %v349 = vsel %vm348, %v341, %v334
    %v350 = vsel %vm348, %v342, %v335
    %v351 = vmul.f32 %v38, %v349
    %v352 = vmul.f32 %v39, %v350
    %353 = vmatprep.subr.mxu0 0.0
    %354 = vmatpush1.msra.mxu0 1.0
    %355 = vmatprep.subr.mxu0 0.0
    %356 = vmatpush1.msra.mxu0 1.0
    %357 = vmatprep.subr.mxu0 0.0
    %358 = vmatpush1.msra.mxu0 1.0
    %359 = vmatprep.subr.mxu0 0.0
    %360 = vmatpush1.msra.mxu0 1.0
    %361 = vmatprep.subr.mxu0 0.0
    %362 = vmatpush1.msra.mxu0 1.0
    %363 = vmatprep.subr.mxu0 0.0
    %364 = vmatpush1.msra.mxu0 1.0
    %365 = vmatprep.subr.mxu0 0.0
    %366 = vmatpush1.msra.mxu0 1.0
    %367 = vmatprep.subr.mxu0 0.0
    %368 = vmatpush1.msra.mxu0 1.0
    %369 = vmatprep.subr.mxu0 0.0
    %370 = vmatpush1.msra.mxu0 1.0
    %371 = vmatprep.subr.mxu0 0.0
    %372 = vmatpush1.msra.mxu0 1.0
    %373 = vmatprep.subr.mxu0 0.0
    %374 = vmatpush1.msra.mxu0 1.0
    %375 = vmatprep.subr.mxu0 0.0
    %376 = vmatpush1.msra.mxu0 1.0
    %377 = vmatprep.subr.mxu0 0.0
    %378 = vmatpush1.msra.mxu0 1.0
    %379 = vmatprep.subr.mxu0 0.0
    %380 = vmatpush1.msra.mxu0 1.0
    %381 = vmatprep.subr.mxu0 0.0
    %382 = vmatpush1.msra.mxu0 1.0
    %383 = vmatprep.subr.mxu0 0.0
    %384 = vmatpush1.msra.mxu0 1.0
    %385 = vmatprep.subr.mxu0 0.0
    %386 = vmatpush2.msra.mxu0 1.0
    %387 = vmatprep.subr.mxu0 0.0
    %388 = vmatpush2.msra.mxu0 1.0
    %389 = vmatprep.subr.mxu0 0.0
    %390 = vmatpush2.msra.mxu0 1.0
    %391 = vmatprep.subr.mxu0 0.0
    %392 = vmatpush2.msra.mxu0 1.0
    %393 = vmatprep.subr.mxu0 0.0
    %394 = vmatpush2.msra.mxu0 1.0
    %395 = vmatprep.subr.mxu0 0.0
    %396 = vmatpush2.msra.mxu0 1.0
    %397 = vmatprep.subr.mxu0 0.0
    %398 = vmatpush2.msra.mxu0 1.0
    %399 = vmatprep.subr.mxu0 0.0
    %400 = vmatpush2.msra.mxu0 1.0
    %401 = vmatprep.subr.mxu0 0.0
    %402 = vmatpush2.msra.mxu0 1.0
    %403 = vmatprep.subr.mxu0 0.0
    %404 = vmatpush2.msra.mxu0 1.0
    %405 = vmatprep.subr.mxu0 0.0
    %406 = vmatpush2.msra.mxu0 1.0
    %407 = vmatprep.subr.mxu0 0.0
    %408 = vmatpush2.msra.mxu0 1.0
    %409 = vmatprep.subr.mxu0 0.0
    %410 = vmatpush2.msra.mxu0 1.0
    %411 = vmatprep.subr.mxu0 0.0
    %412 = vmatpush2.msra.mxu0 1.0
    %413 = vmatprep.subr.mxu0 0.0
    %414 = vmatpush2.msra.mxu0 1.0
    %415 = vmatprep.subr.mxu0 0.0
    %416 = vmatpush2.msra.mxu0 1.0
    %417 = vmatprep.mubr.f32.mxu0 %v352
    %418 = vmatmul.mubr.f32.gmra.mxu0 %v351
    %v419 = vpop.f32.mrf.mxu0
    %v420 = vadd.f32 0.0, %v419
    %v421 = vpop.f32.mrf.mxu0
    %422 = vdwg.mxu0
    %v423 = vadd.f32 %v46, %v128
    %v424 = vmul.f32 %v423, %v196
    %v425 = vsub.f32 %v424, %v420
    %s426 = smul.u32 0, 8
    %v427 = vlaneseq
    %v428 = vshrl.u32 %v427, 7
    %v429 = vstv %s426
    %v430 = vadd.s32 %v429, %v428
    %vm431 = vcmp.lt.s32.totalorder %v430, 8
    %v432 = vsel %vm431, %v425, 0.0
    %vm433 = vcmask 7168
    %434 = vst.msk [vmem:[%s3] sm:$0xff] %vm433, %v432
    // Predicated region
    $region22: #{tpu_custom_call.1} parent=1 // pred_check
      _
    $region23: #{tpu_custom_call.1} parent=1 // pred_check_branch
      %436 = sbr.rel (0) target = $region25
    $region24: #{tpu_custom_call.1} parent=1 // pred_region
      _
    $region25: #{tpu_custom_call.1} parent=1 // pred_fallthru
      _
    // Predicated region
    $region26: #{tpu_custom_call.1} parent=1 // pred_check
      _
    $region27: #{tpu_custom_call.1} parent=1 // pred_check_branch
      %438 = sbr.rel (0) target = $region29
    $region28: #{tpu_custom_call.1} parent=1 // pred_region
      _
    $region29: #{tpu_custom_call.1} parent=1 // pred_fallthru
      _
    %439 = vsyncpa [#allocation3], 1
    %440 = vsyncpa [#allocation5], 1

</llo_original>
